<compile_context>
chip_gen: v5e
topology: v5e:2x2
jax: 0.10.0
libtpu: 0.0.40
codegen_flags: <defaults>
</compile_context>

<pallas_src>
import jax
import jax.numpy as jnp
from jax.experimental import pallas as pl
from jax.experimental.pallas import tpu as pltpu

IN_FEATURES = 4
OUT_FEATURES = 1
ROW_PACK = 128                        # batch rows packed into one lane-dense row
LANE_WIDTH = ROW_PACK * IN_FEATURES   # 512 input floats per packed row (4 vregs)
TBP4_MAX = 4096                       # packed rows per tile -> 8 MiB input / step
TARGET_STEPS = 4                      # >=4 steps: pipelining + both v7x TCs busy
MIN_PALLAS_BATCH = 1024               # below this, plain jnp is faster


def _cdiv(a, b):
    return -(-a // b)


def _round_up(n, m):
    return ((n + m - 1) // m) * m


def _net_kernel(x_ref, m_ref, b_ref, o_ref):
    """x_ref: (tbp4, 512) packed activations: lane 4j+f = feature f of batch row 128r+j
       m_ref: (512, 128)  block-diagonal weights  M[4j+f, j] = w[f]  (VMEM resident)
       b_ref: (1,)        bias scalar in SMEM
       o_ref: (tbp4, 128) sigmoid(x @ W + b), lane-dense: one lane per batch row."""
    z = jnp.dot(x_ref[...], m_ref[...], preferred_element_type=jnp.float32)
    o_ref[...] = jax.nn.sigmoid(z + b_ref[0]).astype(o_ref.dtype)


def _block_diag_weights(w):
    """(512, 128) matrix with M[4j + f, j] = w[f]; single scatter, trivially
    constant-folded / CSE'd when the caller jits over fixed weights."""
    wf = w.astype(jnp.float32).reshape(-1)                       # (4,)
    r = jnp.arange(LANE_WIDTH)                                   # (512,)
    return jnp.zeros((LANE_WIDTH, ROW_PACK), jnp.float32).at[
        r, r // IN_FEATURES].set(wf[r % IN_FEATURES])


def _net_forward_pallas(x2d, w, b):
    batch = x2d.shape[0]
    rows4 = _cdiv(batch, ROW_PACK)                   # lane-dense packed rows

    # Tile: aim for >= TARGET_STEPS grid steps, cap at 8 MiB of input per step,
    # keep a multiple of 8 sublanes.  The ragged last grid block (when tbp4
    # does not divide rows4) is handled by Pallas's boundary masking.
    tbp4 = max(8, min(TBP4_MAX, _round_up(_cdiv(rows4, TARGET_STEPS), 8)))
    grid = _cdiv(rows4, tbp4)

    # Free re-view of the row-major (B, 4) input as (rows4, 512).  Only batches
    # that are not a multiple of 128 need the (copying) zero-pad of the tail;
    # padded rows only ever produce sigmoid(b) values that are sliced off.
    x_flat = x2d.reshape(-1)
    pad = rows4 * LANE_WIDTH - x_flat.shape[0]
    if pad:
        x_flat = jnp.pad(x_flat, (0, pad))
    x_packed = x_flat.reshape(rows4, LANE_WIDTH)

    m = _block_diag_weights(w)
    b_smem = b.astype(jnp.float32).reshape(1)

    out_packed = pl.pallas_call(
        _net_kernel,
        out_shape=jax.ShapeDtypeStruct((rows4, ROW_PACK), jnp.float32),
        grid=(grid,),
        in_specs=[
            pl.BlockSpec((tbp4, LANE_WIDTH), lambda i: (i, 0)),      # activations
            pl.BlockSpec((LANE_WIDTH, ROW_PACK), lambda i: (0, 0)),  # resident weights
            pl.BlockSpec(memory_space=pltpu.MemorySpace.SMEM),       # bias scalar
        ],
        out_specs=pl.BlockSpec((tbp4, ROW_PACK), lambda i: (i, 0)),
        compiler_params=pltpu.CompilerParams(
            dimension_semantics=("parallel",),     # shard batch tiles across TCs (v7x)
            vmem_limit_bytes=32 * 1024 * 1024,     # v5e scoped default is only 16 MiB
        ),
        cost_estimate=pl.CostEstimate(
            flops=2 * rows4 * LANE_WIDTH * ROW_PACK,
            transcendentals=rows4 * ROW_PACK,
            bytes_accessed=rows4 * (LANE_WIDTH + ROW_PACK) * 4
            + LANE_WIDTH * ROW_PACK * 4 + 4,
        ),
    )(x_packed, m, b_smem)

    # Row-major flatten of (rows4, 128) is exactly batch order.
    if rows4 * ROW_PACK == batch:
        return out_packed.reshape(batch, OUT_FEATURES)   # pure bitcast, no copy
    return out_packed.reshape(-1)[:batch].reshape(batch, OUT_FEATURES)


def net_forward(x, w, b, *, min_pallas_batch=MIN_PALLAS_BATCH):
    """Equivalent of Net.forward.

    x : (B, ...) float32 — trailing dims flatten to IN_FEATURES
    w : (IN_FEATURES, OUT_FEATURES) float32   (transposed vs PyTorch's (out,in))
    b : (OUT_FEATURES,) float32
    returns (B, OUT_FEATURES) float32
    """
    batch = x.shape[0]
    x2d = x.reshape(batch, -1)                 # X.view(X.shape[0], -1)  (glue)
    assert x2d.shape[1] == IN_FEATURES
    if batch < min_pallas_batch:
        # Kernel-launch overhead dwarfs a few-hundred-byte matvec.
        return jax.nn.sigmoid(x2d @ w + b[None, :])
    return _net_forward_pallas(x2d, w, b)


def init_params(key):
    """Deterministic init mimicking nn.Linear(4, 1) default U[-1/sqrt(4), 1/sqrt(4)]."""
    kw, kb = jax.random.split(key)
    bound = 1.0 / jnp.sqrt(jnp.float32(IN_FEATURES))
    w = jax.random.uniform(kw, (IN_FEATURES, OUT_FEATURES), jnp.float32, -bound, bound)
    b = jax.random.uniform(kb, (OUT_FEATURES,), jnp.float32, -bound, bound)
    return w, b


if __name__ == "__main__":
    key = jax.random.PRNGKey(0)
    k_a, k_b, k_c, k_p = jax.random.split(key, 4)
    w, b = init_params(k_p)

    def reference(x):
        x2d = x.reshape(x.shape[0], -1)
        return jax.nn.sigmoid(x2d @ w + b[None, :])

    # 1) Pallas path, batch NOT a multiple of 128: exercises the tail zero-pad,
    #    the ragged last grid block and the final slice.
    x_a = jax.random.normal(k_a, (2053, 2, 2), dtype=jnp.float32)
    out_a = net_forward(x_a, w, b)
    jax.block_until_ready(out_a)
    assert out_a.shape == (2053, OUT_FEATURES)
    assert jnp.allclose(out_a, reference(x_a), atol=1e-5), "pallas ragged path mismatch"

    # 2) Pallas path, 128-aligned batch: copy-free fast path with a ragged last
    #    grid block (rows4=9, tile=8, grid=2).
    x_b = jax.random.normal(k_b, (1152, 4), dtype=jnp.float32)
    out_b = net_forward(x_b, w, b)
    jax.block_until_ready(out_b)
    assert out_b.shape == (1152, OUT_FEATURES)
    assert jnp.allclose(out_b, reference(x_b), atol=1e-5), "pallas aligned path mismatch"

    # 3) Tiny-batch fallback path (pure jnp, matches original demo shape).
    x_c = jax.random.normal(k_c, (8, 2, 2), dtype=jnp.float32)
    out_c = net_forward(x_c, w, b)
    jax.block_until_ready(out_c)
    assert out_c.shape == (8, OUT_FEATURES)
    assert jnp.allclose(out_c, reference(x_c), atol=1e-6), "fallback mismatch"

    print("KERNEL_OK")
</pallas_src>

<mosaic_0001>
module attributes {stable_mosaic.version = 11 : i64} {
  func.func @_net_kernel(%arg0: i32, %arg1: memref<8x512xf32, #tpu.memory_space<vmem>>, %arg2: memref<512x128xf32, #tpu.memory_space<vmem>>, %arg3: memref<1xf32, #tpu.memory_space<smem>>, %arg4: memref<8x128xf32, #tpu.memory_space<vmem>>) attributes {dimension_semantics = [#tpu.dimension_semantics<parallel>], iteration_bounds = array<i64: 3>, scalar_prefetch = 0 : i64, scratch_operands = 0 : i64, tpu.core_type = #tpu.core_type<tc>, window_params = [{transform_indices = @transform_0, window_bounds = array<i64: 8, 512>}, {pipeline_mode = #tpu.pipeline_mode<synchronous>, transform_indices = @transform_1, window_bounds = array<i64: 512, 128>}, {transform_indices = @transform_2, window_bounds = array<i64: 1>}, {transform_indices = @transform_3, window_bounds = array<i64: 8, 128>}]} {
    %c0 = arith.constant 0 : index
    %c0_0 = arith.constant 0 : index
    %0 = vector.load %arg1[%c0, %c0_0] : memref<8x512xf32, #tpu.memory_space<vmem>>, vector<8x512xf32>
    %c0_1 = arith.constant 0 : index
    %c0_2 = arith.constant 0 : index
    %1 = vector.load %arg2[%c0_1, %c0_2] : memref<512x128xf32, #tpu.memory_space<vmem>>, vector<512x128xf32>
    %cst = arith.constant dense<0.000000e+00> : vector<8x128xf32>
    %2 = tpu.matmul %0, %1, %cst {dimension_numbers = #tpu.dot_dimension_numbers<[1], [0], [0], [1], [0, 0, 1, 1], [], []>} : vector<8x512xf32>, vector<512x128xf32>, vector<8x128xf32> -> vector<8x128xf32>
    %c0_3 = arith.constant 0 : index
    %3 = memref.load %arg3[%c0_3] : memref<1xf32, #tpu.memory_space<smem>>
    %4 = vector.broadcast %3 : f32 to vector<8x128xf32>
    %5 = arith.addf %2, %4 : vector<8x128xf32>
    %6 = arith.negf %5 : vector<8x128xf32>
    %7 = math.exp %6 : vector<8x128xf32>
    %cst_4 = arith.constant 1.000000e+00 : f32
    %8 = vector.broadcast %cst_4 : f32 to vector<8x128xf32>
    %9 = arith.addf %8, %7 : vector<8x128xf32>
    %10 = arith.divf %8, %9 : vector<8x128xf32>
    %c0_5 = arith.constant 0 : index
    %c0_6 = arith.constant 0 : index
    %11 = vector.load %arg4[%c0_5, %c0_6] : memref<8x128xf32, #tpu.memory_space<vmem>>, vector<8x128xf32>
    tpu.vector_store %arg4[%c0_5, %c0_6], %10 {strides = array<i32>} : memref<8x128xf32, #tpu.memory_space<vmem>>, vector<8x128xf32>,
    return
  }
  func.func @transform_0(%arg0: i32) -> (i32, i32) {
    %c0_i32 = arith.constant 0 : i32
    %c0_i32_0 = arith.constant 0 : i32
    return %arg0, %c0_i32 : i32, i32
  }
  func.func @transform_1(%arg0: i32) -> (i32, i32) {
    %c0_i32 = arith.constant 0 : i32
    %c0_i32_0 = arith.constant 0 : i32
    %c0_i32_1 = arith.constant 0 : i32
    return %c0_i32, %c0_i32_0 : i32, i32
  }
  func.func @transform_2(%arg0: i32) -> i32 {
    %c0_i32 = arith.constant 0 : i32
    %c0_i32_0 = arith.constant 0 : i32
    return %c0_i32 : i32
  }
  func.func @transform_3(%arg0: i32) -> (i32, i32) {
    %c0_i32 = arith.constant 0 : i32
    %c0_i32_0 = arith.constant 0 : i32
    return %arg0, %c0_i32 : i32, i32
  }
}

</mosaic_0001>

<llo_original>
// kernel: tpu_custom_call.1
$region0: #{tpu_custom_call.1}
  #allocation0 [shape = 'u32[]', space=smem, size = 0x4, offset = 0x4, fixed_abs, tag = 'smem constant byte address 0x4 - core index']
  #allocation1 [shape = 'u32[72,128]{1,0:T(1,128)}', space=vmem, size = 0x9000, scoped, tag = 'internal scratch']
  #allocation2 [shape = 'f32[1]{0:T(128)S(6)}', space=smem, size = 0x200, scoped, tag = 'scoped memory for tpu_custom_call.1']
  %s0 = inlined_call_operand.hbm [shape: f32[17,512], index: 0, kind: input, shape index: {}]
  %s1 = inlined_call_operand.hbm [shape: f32[512,128], index: 1, kind: input, shape index: {}]
  %s2 = inlined_call_operand.<no memory space> [shape: f32[1], index: 2, kind: input, shape index: {}]
  %s3 = inlined_call_operand.hbm [shape: f32[17,128], index: 3, kind: output, shape index: {}]
  %s4 = sld [smem:[#allocation0]]
  $region53: #{tpu_custom_call.1} parent=0
    _
  %s6 = ssub.s32 1, %s4
  %s7 = scalar_select 0, %s6, %s4
  %8 = sst [smem:[#allocation2]] %s2
  $region1: #{tpu_custom_call.1} parent=0
    #allocation3 [shape = 'u8[32768]{0}', space=vmem, size = 0x8000, scoped, tag = 'input window, operand 0']
    #allocation4 [shape = 's32[2]{0}', space=sflag, size = 0x8, scoped, tag = 'scoped memory for tpu_custom_call.1']
    #allocation5 [shape = 's32[2]{0}', space=sflag, size = 0x8, scoped, tag = 'scoped memory for tpu_custom_call.1']
    #allocation6 [shape = 'u8[262144]{0}', space=vmem, size = 0x40000, scoped, tag = 'input window, operand 1, single buffered']
    #allocation7 [shape = 's32[1]{0}', space=sflag, size = 0x4, scoped, tag = 'scoped memory for tpu_custom_call.1']
    #allocation8 [shape = 'u8[8192]{0}', space=vmem, size = 0x2000, scoped, tag = 'output window, operand 0']
    %9 = vsyncpa [#allocation4], 0
    %s10 = scalar_lea.sflag [#allocation4], 1
    %11 = vsyncpa %s10, 0
    %12 = vsyncpa [#allocation7], 0
    %13 = vsyncpa [#allocation5], 0
    %s14 = scalar_lea.sflag [#allocation5], 1
    %15 = vsyncpa %s14, 0
    loop: start=0, step=1, limit=5
    $region2: #{tpu_custom_call.1} parent=1 // loop_pre_header
      _
    $region3: #{tpu_custom_call.1} parent=1 // loop_header
      %s17 = sphi 0, %s21
      %p18 = scmp.ge.s32.totalorder %s17, 5
      %s27 = sphi 0, %s29
      %s30 = sphi 0, %s27
      %s31 = sphi 0, %s30
      %s47 = sphi 0, %s31
      %s51 = sphi 0, %s51
      %s53 = sphi 0, %s51
      %s54 = sphi 0, %s53
      %s68 = sphi 0, %s54
      %s72 = sphi 0, %s72
      %s74 = sphi 0, %s72
      %s75 = sphi 0, %s74
      %s89 = sphi 0, %s75
      %s95 = sphi 0, %s97
      %s98 = sphi 0, %s95
      %s99 = sphi 0, %s98
      %s115 = sphi 0, %s99
    $region4: #{tpu_custom_call.1} parent=1 // loop_header_branch
      %20 = sbr.rel (%p18) target = $region8
    $region5: #{tpu_custom_call.1} parent=1 // loop_body
      %s22 = ssub.s32 %s17, 1
      %s23 = ssub.s32 %s17, 2
      %s24 = sadd.s32 %s17, 1
      %s25 = ssub.s32 %s17, %s24
      %p26 = scmp.eq.s32.totalorder %s25, 0
      %s28 = sadd.s32 %s27, 1
      %s29 = scalar_select %p26, %s27, %s28
      %p32 = pneg %p26
      %p33 = scmp.eq.s32.totalorder %s17, 2
      %p34 = por %p32, %p33
      %p35 = scmp.ne.s32.totalorder %s27, %s30
      %p36 = scmp.eq.s32.totalorder %s17, 0
      %p37 = por %p35, %p36
      %p38 = scmp.ne.s32.totalorder %s27, %s30
      %p39 = scmp.eq.s32.totalorder %s22, 2
      %p40 = por %p38, %p39
      %p41 = scmp.ne.s32.totalorder %s30, %s31
      %p42 = scmp.eq.s32.totalorder %s22, 0
      %p43 = por %p41, %p42
      %p44 = scmp.ne.s32.totalorder %s30, %s31
      %p45 = scmp.eq.s32.totalorder %s23, 2
      %p46 = por %p44, %p45
      %p48 = scmp.ne.s32.totalorder %s31, %s47
      %p49 = scmp.eq.s32.totalorder %s23, 0
      %p50 = por %p48, %p49
      %s52 = sadd.s32 %s51, 1
      %p55 = scmp.eq.s32.totalorder %s17, 2
      %p56 = scmp.ne.s32.totalorder %s51, %s53
      %p57 = scmp.eq.s32.totalorder %s17, 0
      %p58 = por %p56, %p57
      %p59 = scmp.ne.s32.totalorder %s51, %s53
      %p60 = scmp.eq.s32.totalorder %s22, 2
      %p61 = por %p59, %p60
      %p62 = scmp.ne.s32.totalorder %s53, %s54
      %p63 = scmp.eq.s32.totalorder %s22, 0
      %p64 = por %p62, %p63
      %p65 = scmp.ne.s32.totalorder %s53, %s54
      %p66 = scmp.eq.s32.totalorder %s23, 2
      %p67 = por %p65, %p66
      %p69 = scmp.ne.s32.totalorder %s54, %s68
      %p70 = scmp.eq.s32.totalorder %s23, 0
      %p71 = por %p69, %p70
      %s73 = sadd.s32 %s72, 1
      %p76 = scmp.eq.s32.totalorder %s17, 2
      %p77 = scmp.ne.s32.totalorder %s72, %s74
      %p78 = scmp.eq.s32.totalorder %s17, 0
      %p79 = por %p77, %p78
      %p80 = scmp.ne.s32.totalorder %s72, %s74
      %p81 = scmp.eq.s32.totalorder %s22, 2
      %p82 = por %p80, %p81
      %p83 = scmp.ne.s32.totalorder %s74, %s75
      %p84 = scmp.eq.s32.totalorder %s22, 0
      %p85 = por %p83, %p84
      %p86 = scmp.ne.s32.totalorder %s74, %s75
      %p87 = scmp.eq.s32.totalorder %s23, 2
      %p88 = por %p86, %p87
      %p90 = scmp.ne.s32.totalorder %s75, %s89
      %p91 = scmp.eq.s32.totalorder %s23, 0
      %p92 = por %p90, %p91
      %s93 = ssub.s32 %s17, %s24
      %p94 = scmp.eq.s32.totalorder %s93, 0
      %s96 = sadd.s32 %s95, 1
      %s97 = scalar_select %p94, %s95, %s96
      %p100 = pneg %p94
      %p101 = scmp.eq.s32.totalorder %s17, 2
      %p102 = por %p100, %p101
      %p103 = scmp.ne.s32.totalorder %s95, %s98
      %p104 = scmp.eq.s32.totalorder %s17, 0
      %p105 = por %p103, %p104
      %p106 = scmp.ne.s32.totalorder %s95, %s98
      %p107 = scmp.eq.s32.totalorder %s22, 2
      %p108 = por %p106, %p107
      %p109 = scmp.ne.s32.totalorder %s98, %s99
      %p110 = scmp.eq.s32.totalorder %s22, 0
      %p111 = por %p109, %p110
      %p112 = scmp.ne.s32.totalorder %s98, %s99
      %p113 = scmp.eq.s32.totalorder %s23, 2
      %p114 = por %p112, %p113
      %p116 = scmp.ne.s32.totalorder %s99, %s115
      %p117 = scmp.eq.s32.totalorder %s23, 0
      %p118 = por %p116, %p117
      %p119 = scmp.le.s32.totalorder 1, %s17
      %p120 = scmp.lt.s32.totalorder %s17, 4
      %p121 = pnand %p119, %p120
      %p122 = pneg %p121
      // Predicated region
      $region9: #{tpu_custom_call.1} parent=5 // pred_check
        _
      $region10: #{tpu_custom_call.1} parent=5 // pred_check_branch
        %124 = sbr.rel (%p121) target = $region12
      $region11: #{tpu_custom_call.1} parent=5 // pred_region
        %s125 = ssub.s32 %s17, 1
        // Predicated region
        $region13: #{tpu_custom_call.1} parent=11 // pred_check
          %p126 = pneg %p64
        $region14: #{tpu_custom_call.1} parent=11 // pred_check_branch
          %128 = sbr.rel (%p126) target = $region16
        $region15: #{tpu_custom_call.1} parent=11 // pred_region
          %130 = vsyncadd [#allocation7], 0
          %s131 = sshll.u32 %s1, 4
          %s132 = int_to_ptr.hbm [resolvable:$true] %s131
          %s133 = sshll.u32 [#allocation6], 4
          %s134 = int_to_ptr.vmem [resolvable:$true] %s133
          %139 = dma.hbm_to_vmem [thread:$0]  %s132, 8192, %s134, [#allocation7], 128, 128, 8
        $region16: #{tpu_custom_call.1} parent=11 // pred_fallthru
          _
        // Predicated region
        $region17: #{tpu_custom_call.1} parent=11 // pred_check
          %p140 = pneg %p85
        $region18: #{tpu_custom_call.1} parent=11 // pred_check_branch
          %142 = sbr.rel (%p140) target = $region20
        $region19: #{tpu_custom_call.1} parent=11 // pred_region
          _
        $region20: #{tpu_custom_call.1} parent=11 // pred_fallthru
          _
      $region12: #{tpu_custom_call.1} parent=5 // pred_fallthru
        _
      %p143 = scmp.lt.s32.totalorder %s17, 3
      // Predicated region
      $region21: #{tpu_custom_call.1} parent=5 // pred_check
        %p144 = pneg %p143
      $region22: #{tpu_custom_call.1} parent=5 // pred_check_branch
        %146 = sbr.rel (%p144) target = $region24
      $region23: #{tpu_custom_call.1} parent=5 // pred_region
        // Predicated region
        $region25: #{tpu_custom_call.1} parent=23 // pred_check
          %p147 = pneg %p37
        $region26: #{tpu_custom_call.1} parent=23 // pred_check_branch
          %149 = sbr.rel (%p147) target = $region28
        $region27: #{tpu_custom_call.1} parent=23 // pred_region
          %s150 = sand.u32 %s27, 1
          %s151 = scalar_lea.sflag [#allocation4], %s150
          %s152 = sand.u32 %s27, 1
          %s153 = smul.addr %s152, 32
          %s154 = scalar_lea.vmem [#allocation3], %s153
          %156 = vsyncadd %s151, 0
          %s157 = smul.addr %s17, 4
          %s158 = smul.addr %s157, 8
          %s159 = scalar_lea.hbm %s0, %s158
          %s161 = sshll.u32 %s159, 4
          %s162 = int_to_ptr.hbm [resolvable:$true] %s161
          %s163 = sshll.u32 %s154, 4
          %s164 = int_to_ptr.vmem [resolvable:$true] %s163
          %166 = dma.hbm_to_vmem [thread:$0]  %s162, 512, %s164, %s151
        $region28: #{tpu_custom_call.1} parent=23 // pred_fallthru
          _
      $region24: #{tpu_custom_call.1} parent=5 // pred_fallthru
        _
      %p167 = scmp.le.s32.totalorder 1, %s17
      %p168 = scmp.lt.s32.totalorder %s17, 4
      %p169 = pnand %p167, %p168
      %p170 = pneg %p169
      // Predicated region
      $region29: #{tpu_custom_call.1} parent=5 // pred_check
        _
      $region30: #{tpu_custom_call.1} parent=5 // pred_check_branch
        %172 = sbr.rel (%p169) target = $region32
      $region31: #{tpu_custom_call.1} parent=5 // pred_region
        %s173 = ssub.s32 %s17, 1
        %s174 = sand.u32 %s30, 1
        %s175 = scalar_lea.sflag [#allocation4], %s174
        %s176 = sand.u32 %s30, 1
        %s177 = smul.addr %s176, 32
        %s178 = scalar_lea.vmem [#allocation3], %s177
        // Predicated region
        $region33: #{tpu_custom_call.1} parent=31 // pred_check
          %p179 = pneg %p43
        $region34: #{tpu_custom_call.1} parent=31 // pred_check_branch
          %181 = sbr.rel (%p179) target = $region36
        $region35: #{tpu_custom_call.1} parent=31 // pred_region
          %183 = dma.done %s175, 512
        $region36: #{tpu_custom_call.1} parent=31 // pred_fallthru
          _
        // Predicated region
        $region37: #{tpu_custom_call.1} parent=31 // pred_check
          %p184 = pneg %p64
        $region38: #{tpu_custom_call.1} parent=31 // pred_check_branch
          %186 = sbr.rel (%p184) target = $region40
        $region39: #{tpu_custom_call.1} parent=31 // pred_region
          %188 = dma.done [#allocation7], 8192
        $region40: #{tpu_custom_call.1} parent=31 // pred_fallthru
          _
        %s189 = sand.u32 %s30, 1
        %s190 = scalar_lea.sflag [#allocation4], %s189
        %s191 = sand.u32 %s30, 1
        %s192 = smul.addr %s191, 32
        %s193 = scalar_lea.vmem [#allocation3], %s192
        %p194 = pneg %p43
        %p195 = pneg %p40
        %p196 = pneg %p64
        %p197 = pneg %p61
        %p198 = pneg %p85
        %p199 = pneg %p82
        %p200 = pneg %p111
        %p201 = pneg %p108
        %s202 = sand.u32 %s98, 1
        %s203 = scalar_lea.sflag [#allocation5], %s202
        %s204 = sand.u32 %s98, 1
        %s205 = smul.addr %s204, 8
        %s206 = scalar_lea.vmem [#allocation8], %s205
        %v207 = vld [vmem:[%s178] sm:$0xff]
        %v208 = vld [vmem:[%s178 + $0x8] sm:$0xff]
        %v209 = vld [vmem:[%s178 + $0x10] sm:$0xff]
        %v210 = vld [vmem:[%s178 + $0x18] sm:$0xff]
        %v211 = vld [vmem:[#allocation6] sm:$0xff]
        %v212 = vld [vmem:[#allocation6 + $0x8] sm:$0xff]
        %v213 = vld [vmem:[#allocation6 + $0x10] sm:$0xff]
        %v214 = vld [vmem:[#allocation6 + $0x18] sm:$0xff]
        %v215 = vld [vmem:[#allocation6 + $0x20] sm:$0xff]
        %v216 = vld [vmem:[#allocation6 + $0x28] sm:$0xff]
        %v217 = vld [vmem:[#allocation6 + $0x30] sm:$0xff]
        %v218 = vld [vmem:[#allocation6 + $0x38] sm:$0xff]
        %v219 = vld [vmem:[#allocation6 + $0x40] sm:$0xff]
        %v220 = vld [vmem:[#allocation6 + $0x48] sm:$0xff]
        %v221 = vld [vmem:[#allocation6 + $0x50] sm:$0xff]
        %v222 = vld [vmem:[#allocation6 + $0x58] sm:$0xff]
        %v223 = vld [vmem:[#allocation6 + $0x60] sm:$0xff]
        %v224 = vld [vmem:[#allocation6 + $0x68] sm:$0xff]
        %v225 = vld [vmem:[#allocation6 + $0x70] sm:$0xff]
        %v226 = vld [vmem:[#allocation6 + $0x78] sm:$0xff]
        %v227 = vld [vmem:[#allocation6 + $0x80] sm:$0xff]
        %v228 = vld [vmem:[#allocation6 + $0x88] sm:$0xff]
        %v229 = vld [vmem:[#allocation6 + $0x90] sm:$0xff]
        %v230 = vld [vmem:[#allocation6 + $0x98] sm:$0xff]
        %v231 = vld [vmem:[#allocation6 + $0xa0] sm:$0xff]
        %v232 = vld [vmem:[#allocation6 + $0xa8] sm:$0xff]
        %v233 = vld [vmem:[#allocation6 + $0xb0] sm:$0xff]
        %v234 = vld [vmem:[#allocation6 + $0xb8] sm:$0xff]
        %v235 = vld [vmem:[#allocation6 + $0xc0] sm:$0xff]
        %v236 = vld [vmem:[#allocation6 + $0xc8] sm:$0xff]
        %v237 = vld [vmem:[#allocation6 + $0xd0] sm:$0xff]
        %v238 = vld [vmem:[#allocation6 + $0xd8] sm:$0xff]
        %v239 = vld [vmem:[#allocation6 + $0xe0] sm:$0xff]
        %v240 = vld [vmem:[#allocation6 + $0xe8] sm:$0xff]
        %v241 = vld [vmem:[#allocation6 + $0xf0] sm:$0xff]
        %v242 = vld [vmem:[#allocation6 + $0xf8] sm:$0xff]
        %v243 = vld [vmem:[#allocation6 + $0x100] sm:$0xff]
        %v244 = vld [vmem:[#allocation6 + $0x108] sm:$0xff]
        %v245 = vld [vmem:[#allocation6 + $0x110] sm:$0xff]
        %v246 = vld [vmem:[#allocation6 + $0x118] sm:$0xff]
        %v247 = vld [vmem:[#allocation6 + $0x120] sm:$0xff]
        %v248 = vld [vmem:[#allocation6 + $0x128] sm:$0xff]
        %v249 = vld [vmem:[#allocation6 + $0x130] sm:$0xff]
        %v250 = vld [vmem:[#allocation6 + $0x138] sm:$0xff]
        %v251 = vld [vmem:[#allocation6 + $0x140] sm:$0xff]
        %v252 = vld [vmem:[#allocation6 + $0x148] sm:$0xff]
        %v253 = vld [vmem:[#allocation6 + $0x150] sm:$0xff]
        %v254 = vld [vmem:[#allocation6 + $0x158] sm:$0xff]
        %v255 = vld [vmem:[#allocation6 + $0x160] sm:$0xff]
        %v256 = vld [vmem:[#allocation6 + $0x168] sm:$0xff]
        %v257 = vld [vmem:[#allocation6 + $0x170] sm:$0xff]
        %v258 = vld [vmem:[#allocation6 + $0x178] sm:$0xff]
        %v259 = vld [vmem:[#allocation6 + $0x180] sm:$0xff]
        %v260 = vld [vmem:[#allocation6 + $0x188] sm:$0xff]
        %v261 = vld [vmem:[#allocation6 + $0x190] sm:$0xff]
        %v262 = vld [vmem:[#allocation6 + $0x198] sm:$0xff]
        %v263 = vld [vmem:[#allocation6 + $0x1a0] sm:$0xff]
        %v264 = vld [vmem:[#allocation6 + $0x1a8] sm:$0xff]
        %v265 = vld [vmem:[#allocation6 + $0x1b0] sm:$0xff]
        %v266 = vld [vmem:[#allocation6 + $0x1b8] sm:$0xff]
        %v267 = vld [vmem:[#allocation6 + $0x1c0] sm:$0xff]
        %v268 = vld [vmem:[#allocation6 + $0x1c8] sm:$0xff]
        %v269 = vld [vmem:[#allocation6 + $0x1d0] sm:$0xff]
        %v270 = vld [vmem:[#allocation6 + $0x1d8] sm:$0xff]
        %v271 = vld [vmem:[#allocation6 + $0x1e0] sm:$0xff]
        %v272 = vld [vmem:[#allocation6 + $0x1e8] sm:$0xff]
        %v273 = vld [vmem:[#allocation6 + $0x1f0] sm:$0xff]
        %v274 = vld [vmem:[#allocation6 + $0x1f8] sm:$0xff]
        %s275 = sld [smem:[#allocation2]]
        %v276 = vstv %s275
        %277 = vmatpush.msra.mxu0 %v226
        %278 = vmatpush.msra.mxu0 %v225
        %279 = vmatpush.msra.mxu0 %v224
        %280 = vmatpush.msra.mxu0 %v223
        %281 = vmatpush.msra.mxu0 %v222
        %282 = vmatpush.msra.mxu0 %v221
        %283 = vmatpush.msra.mxu0 %v220
        %284 = vmatpush.msra.mxu0 %v219
        %285 = vmatpush.msra.mxu0 %v218
        %286 = vmatpush.msra.mxu0 %v217
        %287 = vmatpush.msra.mxu0 %v216
        %288 = vmatpush.msra.mxu0 %v215
        %289 = vmatpush.msra.mxu0 %v214
        %290 = vmatpush.msra.mxu0 %v213
        %291 = vmatpush.msra.mxu0 %v212
        %292 = vmatpush.msra.mxu0 %v211
        %293 = vmatmul.f32.gmra.mxu0 %v207
        %v294 = vpop.f32.mrf.mxu0
        %v295 = vadd.f32 %v276, %v294
        %296 = vdwg.mxu0
        %297 = vmatpush.msra.mxu0 %v242
        %298 = vmatpush.msra.mxu0 %v241
        %299 = vmatpush.msra.mxu0 %v240
        %300 = vmatpush.msra.mxu0 %v239
        %301 = vmatpush.msra.mxu0 %v238
        %302 = vmatpush.msra.mxu0 %v237
        %303 = vmatpush.msra.mxu0 %v236
        %304 = vmatpush.msra.mxu0 %v235
        %305 = vmatpush.msra.mxu0 %v234
        %306 = vmatpush.msra.mxu0 %v233
        %307 = vmatpush.msra.mxu0 %v232
        %308 = vmatpush.msra.mxu0 %v231
        %309 = vmatpush.msra.mxu0 %v230
        %310 = vmatpush.msra.mxu0 %v229
        %311 = vmatpush.msra.mxu0 %v228
        %312 = vmatpush.msra.mxu0 %v227
        %313 = vmatmul.f32.gmra.mxu0 %v208
        %v314 = vpop.f32.mrf.mxu0
        %v315 = vadd.f32 %v295, %v314
        %316 = vdwg.mxu0
        %317 = vmatpush.msra.mxu0 %v258
        %318 = vmatpush.msra.mxu0 %v257
        %319 = vmatpush.msra.mxu0 %v256
        %320 = vmatpush.msra.mxu0 %v255
        %321 = vmatpush.msra.mxu0 %v254
        %322 = vmatpush.msra.mxu0 %v253
        %323 = vmatpush.msra.mxu0 %v252
        %324 = vmatpush.msra.mxu0 %v251
        %325 = vmatpush.msra.mxu0 %v250
        %326 = vmatpush.msra.mxu0 %v249
        %327 = vmatpush.msra.mxu0 %v248
        %328 = vmatpush.msra.mxu0 %v247
        %329 = vmatpush.msra.mxu0 %v246
        %330 = vmatpush.msra.mxu0 %v245
        %331 = vmatpush.msra.mxu0 %v244
        %332 = vmatpush.msra.mxu0 %v243
        %333 = vmatmul.f32.gmra.mxu0 %v209
        %v334 = vpop.f32.mrf.mxu0
        %v335 = vadd.f32 %v315, %v334
        %336 = vdwg.mxu0
        %337 = vmatpush.msra.mxu0 %v274
        %338 = vmatpush.msra.mxu0 %v273
        %339 = vmatpush.msra.mxu0 %v272
        %340 = vmatpush.msra.mxu0 %v271
        %341 = vmatpush.msra.mxu0 %v270
        %342 = vmatpush.msra.mxu0 %v269
        %343 = vmatpush.msra.mxu0 %v268
        %344 = vmatpush.msra.mxu0 %v267
        %345 = vmatpush.msra.mxu0 %v266
        %346 = vmatpush.msra.mxu0 %v265
        %347 = vmatpush.msra.mxu0 %v264
        %348 = vmatpush.msra.mxu0 %v263
        %349 = vmatpush.msra.mxu0 %v262
        %350 = vmatpush.msra.mxu0 %v261
        %351 = vmatpush.msra.mxu0 %v260
        %352 = vmatpush.msra.mxu0 %v259
        %353 = vmatmul.f32.gmra.mxu0 %v210
        %v354 = vpop.f32.mrf.mxu0
        %v355 = vadd.f32 %v335, %v354
        %356 = vdwg.mxu0
        %v357 = vxor.u32 %v355, 2147483648
        %v358 = vmul.f32 %v357, 1.442695
        %v359 = vpow.pop %v358
        %v360 = vadd.f32 %v359, 1.0
        %v361 = vrcp.pop %v360
        %v362 = vmul.f32 %v360, %v361
        %v363 = vsub.f32 1.0, %v362
        %v364 = vmul.f32 %v361, %v363
        %v365 = vadd.f32 %v361, %v364
        %vm366 = vweird.f32 %v360
        %vm367 = vweird.f32 %v361
        %vm368 = vmor %vm366, %vm367
        %v369 = vsel %vm368, %v361, %v365
        %v370 = vand.u32 2147483647, %v360
        %vm371 = vcmp.eq.f32.partialorder %v370, 8.507059e+37
        %v372 = vand.u32 %v360, 2147483648
        %v373 = vor.u32 1.1754944e-38, %v372
        %v374 = vsel %vm371, %v373, %v369
        %v375 = vmul.f32 1.0, %v374
        %376 = vst [vmem:[%s206] sm:$0xff] %v375
        %s377 = sand.u32 %s98, 1
        %s378 = scalar_lea.sflag [#allocation5], %s377
        %s379 = sand.u32 %s98, 1
        %s380 = smul.addr %s379, 8
        %s381 = scalar_lea.vmem [#allocation8], %s380
        // Predicated region
        $region41: #{tpu_custom_call.1} parent=31 // pred_check
          %p382 = pneg %p108
        $region42: #{tpu_custom_call.1} parent=31 // pred_check_branch
          %384 = sbr.rel (%p382) target = $region44
        $region43: #{tpu_custom_call.1} parent=31 // pred_region
          %386 = vsyncadd %s378, 0
          %s387 = smul.addr %s22, 8
          %s388 = scalar_lea.hbm %s3, %s387
          %s390 = sshll.u32 %s381, 4
          %s391 = int_to_ptr.vmem [resolvable:$true] %s390
          %s392 = sshll.u32 %s388, 4
          %s393 = int_to_ptr.hbm [resolvable:$true] %s392
          %395 = dma.vmem_to_hbm [thread:$0]  %s391, 128, %s393, %s378
        $region44: #{tpu_custom_call.1} parent=31 // pred_fallthru
          _
      $region32: #{tpu_custom_call.1} parent=5 // pred_fallthru
        _
      %p396 = scmp.le.s32.totalorder 2, %s17
      // Predicated region
      $region45: #{tpu_custom_call.1} parent=5 // pred_check
        %p397 = pneg %p396
      $region46: #{tpu_custom_call.1} parent=5 // pred_check_branch
        %399 = sbr.rel (%p397) target = $region48
      $region47: #{tpu_custom_call.1} parent=5 // pred_region
        %s400 = ssub.s32 %s17, 2
        // Predicated region
        $region49: #{tpu_custom_call.1} parent=47 // pred_check
          %p401 = pneg %p114
        $region50: #{tpu_custom_call.1} parent=47 // pred_check_branch
          %403 = sbr.rel (%p401) target = $region52
        $region51: #{tpu_custom_call.1} parent=47 // pred_region
          %s404 = sand.u32 %s99, 1
          %s405 = scalar_lea.sflag [#allocation5], %s404
          %s406 = sand.u32 %s99, 1
          %s407 = smul.addr %s406, 8
          %s408 = scalar_lea.vmem [#allocation8], %s407
          %410 = dma.done %s405, 128
        $region52: #{tpu_custom_call.1} parent=47 // pred_fallthru
          _
      $region48: #{tpu_custom_call.1} parent=5 // pred_fallthru
        _
    $region6: #{tpu_custom_call.1} parent=1 // loop_footer
      %s21 = sadd.s32 1, %s17
    $region7: #{tpu_custom_call.1} parent=1 // loop_footer_branch
      %16 = sbr.rel target = $region3
    $region8: #{tpu_custom_call.1} parent=1 // loop_exit
      _
    %411 = vsyncpa [#allocation4], 1
    %s412 = scalar_lea.sflag [#allocation4], 1
    %413 = vsyncpa %s412, 1
    %414 = vsyncpa [#allocation7], 1
    %415 = vsyncpa [#allocation5], 1
    %s416 = scalar_lea.sflag [#allocation5], 1
    %417 = vsyncpa %s416, 1

</llo_original>
